<compile_context>
chip_gen: v7x
topology: tpu7x:2x2x1
jax: 0.10.0
libtpu: 0.0.40
codegen_flags: <defaults>
</compile_context>

<pallas_src>
import functools

import jax
import jax.numpy as jnp
from jax.experimental import pallas as pl
from jax.experimental.pallas import tpu as pltpu


def _rmsnorm_kernel(x_ref, w_ref, o_ref, *, eps, inv_h, input_dtype):
    # x_ref: (tile_rows, Hp), w_ref: (1, Hp), o_ref: (tile_rows, Hp)
    x32 = x_ref[...].astype(jnp.float32)
    # Divide by the *true* H (inv_h), so zero-padded lanes never skew variance.
    var = jnp.sum(x32 * x32, axis=-1, keepdims=True) * inv_h
    xn = x32 * jax.lax.rsqrt(var + eps)
    # PyTorch parity: cast x_norm back to the input dtype before the weight
    # multiply; jnp promotion then yields promote(input_dtype, weight.dtype).
    o_ref[...] = (w_ref[...] * xn.astype(input_dtype)).astype(o_ref.dtype)


def _vmem_budget_and_limit():
    """Chip-aware (pipelined-buffer budget, scoped vmem limit) in bytes."""
    cap = 128 * 1024 * 1024  # v5e/v6e default if query is unavailable
    try:
        info = pltpu.get_tpu_info()
        cap = int(getattr(info, "vmem_capacity_bytes", cap)) or cap
    except Exception:
        pass
    budget = cap // 8                                  # 16 MiB v5e/v6e, 8 MiB v7x
    limit = min((cap * 5) // 8, 64 * 1024 * 1024)      # 64 MiB v5e/v6e, 40 MiB v7x
    return budget, limit


def _pick_tile_rows(rows, hp, in_itemsize, out_itemsize, buf_budget_bytes):
    """Largest sublane-aligned row tile fitting the pipelined-buffer budget
    (double-buffered in/out + live f32 temporaries), capped at 1024 rows,
    then split so the grid has >= 2 steps when there is enough work."""
    # Sublane packing multiple for the input dtype.
    sub = {1: 32, 2: 16}.get(in_itemsize, 8)
    # Double-buffered input + output tiles, plus ~2 live f32 temporaries per
    # row (x32 upcast and the pre-cast product) which BlockSpec doesn't count.
    per_row = 2 * hp * (in_itemsize + out_itemsize) + 2 * 4 * hp
    fit = max(buf_budget_bytes // max(per_row, 1), sub)
    tile = min((fit // sub) * sub, 1024)
    rows_rounded = ((rows + sub - 1) // sub) * sub
    tile = max(min(tile, rows_rounded), sub)
    # Guarantee >= 2 grid steps so v7x's two TensorCores both get a share of
    # the "parallel" axis (costs ~nothing on single-TC v5e/v6e).
    if rows_rounded > 2 * sub and tile >= rows_rounded:
        half = ((rows_rounded // 2) + sub - 1) // sub * sub
        tile = max(min(half, tile), sub)
    return tile


def zamba2_rmsnorm(hidden_states, weight, eps=1e-6, tile_rows=None):
    """hidden_states: (..., H); weight: (H,)."""
    orig_shape = hidden_states.shape
    H = orig_shape[-1]
    x2d = hidden_states.reshape(-1, H)
    rows = x2d.shape[0]
    input_dtype = hidden_states.dtype

    # PyTorch: weight * x_norm.to(input_dtype) promotes to the weight dtype.
    out_dtype = jnp.promote_types(input_dtype, weight.dtype)

    # Lane-dense layout: pad the hidden dim to a multiple of 128 when needed
    # (masked lane stores waste most of the 128-lane bandwidth otherwise).
    # Padded lanes are zero -> they contribute nothing to the sum of squares
    # (we divide by the true H inside the kernel) and are sliced off below.
    Hp = ((H + 127) // 128) * 128
    if Hp != H:
        x2d = jnp.pad(x2d, ((0, 0), (0, Hp - H)))
        w = jnp.pad(weight, (0, Hp - H))
    else:
        w = weight
    w2d = w.reshape(1, Hp)  # kept in its native dtype; no per-step astype

    in_b = jnp.dtype(input_dtype).itemsize
    out_b = jnp.dtype(out_dtype).itemsize
    w_b = jnp.dtype(weight.dtype).itemsize

    buf_budget, vmem_limit = _vmem_budget_and_limit()
    if tile_rows is None:
        tile_rows = _pick_tile_rows(rows, Hp, in_b, out_b, buf_budget)

    # Ragged last block is handled by Pallas (masked load/store); the
    # reduction is per-row along H, so garbage rows never leak.
    grid = (pl.cdiv(rows, tile_rows),)

    cost = pl.CostEstimate(
        flops=4 * rows * Hp,
        transcendentals=rows,
        bytes_accessed=rows * Hp * (in_b + out_b) + Hp * w_b,
    )

    out = pl.pallas_call(
        functools.partial(
            _rmsnorm_kernel, eps=eps, inv_h=1.0 / H, input_dtype=input_dtype
        ),
        out_shape=jax.ShapeDtypeStruct((rows, Hp), out_dtype),
        grid_spec=pltpu.PrefetchScalarGridSpec(
            num_scalar_prefetch=0,
            grid=grid,
            in_specs=[
                pl.BlockSpec((tile_rows, Hp), lambda i: (i, 0)),
                # Constant index_map -> the weight row is DMA'd once and
                # stays resident across grid steps.
                pl.BlockSpec((1, Hp), lambda i: (0, 0)),
            ],
            out_specs=pl.BlockSpec((tile_rows, Hp), lambda i: (i, 0)),
        ),
        compiler_params=pltpu.CompilerParams(
            dimension_semantics=("parallel",),
            vmem_limit_bytes=vmem_limit,
        ),
        cost_estimate=cost,
    )(x2d, w2d)

    if Hp != H:
        out = out[:, :H]
    return out.reshape(orig_shape[:-1] + (H,))


def _reference(hidden_states, weight, eps=1e-6):
    input_dtype = hidden_states.dtype
    x32 = hidden_states.astype(jnp.float32)
    var = jnp.mean(x32 * x32, axis=-1, keepdims=True)
    xn = x32 * jax.lax.rsqrt(var + eps)
    return weight * xn.astype(input_dtype)


if __name__ == "__main__":
    key = jax.random.PRNGKey(0)

    # --- Test 1: module-consistent small shapes (f32, H < 128 -> padded path)
    batch, seq, hidden = 2, 8, 32
    kx, kw, kx2 = jax.random.split(key, 3)
    x = jax.random.normal(kx, (batch, seq, hidden), dtype=jnp.float32)
    # Module initializes weight to ones; perturb slightly so the elementwise
    # scale is actually exercised.
    weight = jnp.ones((hidden,), dtype=jnp.float32) + 0.01 * jnp.arange(
        hidden, dtype=jnp.float32
    )

    out = zamba2_rmsnorm(x, weight, eps=1e-6)
    out = jax.block_until_ready(out)
    ref = _reference(x, weight, eps=1e-6)
    assert out.shape == x.shape
    assert out.dtype == jnp.promote_types(x.dtype, weight.dtype)
    assert jnp.allclose(out, ref, atol=1e-5, rtol=1e-5), "f32 mismatch vs reference"

    # --- Test 2: bf16 activations, ragged row count, lane-dense H (no pad),
    #             multi-step grid (exercises the masked last block).
    batch2, seq2, hidden2 = 3, 25, 256
    x_bf16 = jax.random.normal(kx2, (batch2, seq2, hidden2), dtype=jnp.float32)
    x_bf16 = x_bf16.astype(jnp.bfloat16)
    weight2 = jnp.ones((hidden2,), dtype=jnp.float32)

    out2 = zamba2_rmsnorm(x_bf16, weight2, eps=1e-6)
    out2 = jax.block_until_ready(out2)
    ref2 = _reference(x_bf16, weight2, eps=1e-6)
    assert out2.shape == x_bf16.shape
    assert out2.dtype == jnp.promote_types(x_bf16.dtype, weight2.dtype)
    assert jnp.allclose(out2, ref2, atol=1e-2, rtol=1e-2), "bf16 mismatch vs reference"

    print("KERNEL_OK")
</pallas_src>

<mosaic_0001>
module attributes {stable_mosaic.version = 11 : i64} {
  func.func @_rmsnorm_kernel(%arg0: i32, %arg1: memref<16x128xf32, #tpu.memory_space<vmem>>, %arg2: memref<1x128xf32, #tpu.memory_space<vmem>>, %arg3: memref<16x128xf32, #tpu.memory_space<vmem>>) attributes {dimension_semantics = [#tpu.dimension_semantics<parallel>], iteration_bounds = array<i64: 1>, scalar_prefetch = 0 : i64, scratch_operands = 0 : i64, tpu.core_type = #tpu.core_type<tc>, window_params = [{transform_indices = @transform_0, window_bounds = array<i64: 16, 128>}, {pipeline_mode = #tpu.pipeline_mode<synchronous>, transform_indices = @transform_1, window_bounds = array<i64: 1, 128>}, {transform_indices = @transform_2, window_bounds = array<i64: 16, 128>}]} {
    %c0 = arith.constant 0 : index
    %c0_0 = arith.constant 0 : index
    %0 = vector.load %arg1[%c0, %c0_0] : memref<16x128xf32, #tpu.memory_space<vmem>>, vector<16x128xf32>
    %1 = arith.mulf %0, %0 : vector<16x128xf32>
    %cst = arith.constant dense<0.000000e+00> : vector<16xf32>
    %2 = vector.multi_reduction <add>, %1, %cst [1] : vector<16x128xf32> to vector<16xf32>
    %3 = vector.shape_cast %2 : vector<16xf32> to vector<16x1xf32>
    %cst_1 = arith.constant 3.125000e-02 : f32
    %4 = vector.broadcast %cst_1 : f32 to vector<16x1xf32>
    %5 = arith.mulf %3, %4 : vector<16x1xf32>
    %cst_2 = arith.constant 9.99999997E-7 : f32
    %6 = vector.broadcast %cst_2 : f32 to vector<16x1xf32>
    %7 = arith.addf %5, %6 : vector<16x1xf32>
    %8 = math.rsqrt %7 : vector<16x1xf32>
    %9 = vector.broadcast %8 : vector<16x1xf32> to vector<16x128xf32>
    %10 = arith.mulf %0, %9 : vector<16x128xf32>
    %c0_3 = arith.constant 0 : index
    %c0_4 = arith.constant 0 : index
    %11 = vector.load %arg2[%c0_3, %c0_4] : memref<1x128xf32, #tpu.memory_space<vmem>>, vector<1x128xf32>
    %12 = vector.broadcast %11 : vector<1x128xf32> to vector<16x128xf32>
    %13 = arith.mulf %12, %10 : vector<16x128xf32>
    %c0_5 = arith.constant 0 : index
    %c0_6 = arith.constant 0 : index
    %14 = vector.load %arg3[%c0_5, %c0_6] : memref<16x128xf32, #tpu.memory_space<vmem>>, vector<16x128xf32>
    tpu.vector_store %arg3[%c0_5, %c0_6], %13 {strides = array<i32>} : memref<16x128xf32, #tpu.memory_space<vmem>>, vector<16x128xf32>,
    return
  }
  func.func @transform_0(%arg0: i32) -> (i32, i32) {
    %c0_i32 = arith.constant 0 : i32
    %c0_i32_0 = arith.constant 0 : i32
    return %arg0, %c0_i32 : i32, i32
  }
  func.func @transform_1(%arg0: i32) -> (i32, i32) {
    %c0_i32 = arith.constant 0 : i32
    %c0_i32_0 = arith.constant 0 : i32
    %c0_i32_1 = arith.constant 0 : i32
    return %c0_i32, %c0_i32_0 : i32, i32
  }
  func.func @transform_2(%arg0: i32) -> (i32, i32) {
    %c0_i32 = arith.constant 0 : i32
    %c0_i32_0 = arith.constant 0 : i32
    return %arg0, %c0_i32 : i32, i32
  }
}

</mosaic_0001>

<llo_original>
// kernel: tpu_custom_call.1
$region0: #{tpu_custom_call.1}
  #allocation0 [shape = 'u32[]', space=smem, size = 0x4, offset = 0x4, fixed_abs, tag = 'smem constant byte address 0x4 - core index']
  #allocation1 [shape = 'u32[144,128]{1,0:T(1,128)}', space=vmem, size = 0x12000, scoped, tag = 'internal scratch']
  %s0 = inlined_call_operand.hbm [shape: f32[16,128], index: 0, kind: input, shape index: {}]
  %s1 = inlined_call_operand.hbm [shape: f32[1,128], index: 1, kind: input, shape index: {}]
  %s2 = inlined_call_operand.hbm [shape: f32[16,128], index: 2, kind: output, shape index: {}]
  %s3 = sld [smem:[#allocation0]]
  $region26: #{tpu_custom_call.1} parent=0
    _
  %s5 = ssub.s32 1, %s3
  %s6 = scalar_select 0, %s5, %s3
  $region1: #{tpu_custom_call.1} parent=0
    #allocation2 [shape = 'u8[8192]{0}', space=vmem, size = 0x2000, scoped, tag = 'input window, operand 0, single buffered']
    #allocation3 [shape = 's32[1]{0}', space=sflag, size = 0x4, scoped, tag = 'scoped memory for tpu_custom_call.1']
    #allocation4 [shape = 's32[1]{0}', space=sflag, size = 0x4, scoped, tag = 'scoped memory for tpu_custom_call.1']
    #allocation5 [shape = 'u8[512]{0}', space=vmem, size = 0x400, scoped, tag = 'input window, operand 1, single buffered']
    #allocation6 [shape = 's32[1]{0}', space=sflag, size = 0x4, scoped, tag = 'scoped memory for tpu_custom_call.1']
    #allocation7 [shape = 'u8[8192]{0}', space=vmem, size = 0x2000, scoped, tag = 'output window, operand 0, single buffered']
    %7 = vsyncpa [#allocation3], 0
    %8 = vsyncpa [#allocation6], 0
    %9 = vsyncpa [#allocation4], 0
    // Predicated region
    $region2: #{tpu_custom_call.1} parent=1 // pred_check
      _
    $region3: #{tpu_custom_call.1} parent=1 // pred_check_branch
      %11 = sbr.rel (0) target = $region5
    $region4: #{tpu_custom_call.1} parent=1 // pred_region
      %s13 = ssub.s32 256, 256
      %14 = vsyncadd [#allocation3], %s13
      %s15 = sshll.u32 [#allocation2], 4
      %s16 = int_to_ptr.vmem [resolvable:$true] %s15
      %21 = dma.hbm_to_vmem [thread:$0]  %s0, 256, %s16, [#allocation3], 128, 128, 8
    $region5: #{tpu_custom_call.1} parent=1 // pred_fallthru
      _
    // Predicated region
    $region6: #{tpu_custom_call.1} parent=1 // pred_check
      _
    $region7: #{tpu_custom_call.1} parent=1 // pred_check_branch
      %23 = sbr.rel (0) target = $region9
    $region8: #{tpu_custom_call.1} parent=1 // pred_region
      %s25 = ssub.s32 16, 16
      %26 = vsyncadd [#allocation6], %s25
      %s28 = sshll.u32 [#allocation5], 4
      %s29 = int_to_ptr.vmem [resolvable:$true] %s28
      %31 = dma.hbm_to_vmem [thread:$0]  %s1, 16, %s29, [#allocation6]
    $region9: #{tpu_custom_call.1} parent=1 // pred_fallthru
      _
    // Predicated region
    $region10: #{tpu_custom_call.1} parent=1 // pred_check
      _
    $region11: #{tpu_custom_call.1} parent=1 // pred_check_branch
      %33 = sbr.rel (0) target = $region13
    $region12: #{tpu_custom_call.1} parent=1 // pred_region
      %34 = dma.done [#allocation3], 256
    $region13: #{tpu_custom_call.1} parent=1 // pred_fallthru
      _
    // Predicated region
    $region14: #{tpu_custom_call.1} parent=1 // pred_check
      _
    $region15: #{tpu_custom_call.1} parent=1 // pred_check_branch
      %36 = sbr.rel (0) target = $region17
    $region16: #{tpu_custom_call.1} parent=1 // pred_region
      %37 = dma.done [#allocation6], 16
    $region17: #{tpu_custom_call.1} parent=1 // pred_fallthru
      _
    %v38 = vld [vmem:[#allocation2] sm:$0xff]
    %v39 = vld [vmem:[#allocation2 + $0x8] sm:$0xff]
    %v40 = vmul.f32 %v38, %v38
    %v41 = vmul.f32 %v39, %v39
    %42 = vadd.xlane.f32.xlu0 %v40
    %v43 = vpop.xlane.xlu0 %42
    %44 = vadd.xlane.f32.xlu0 %v41
    %v45 = vpop.xlane.xlu0 %44
    %v46 = vmul.f32 %v43, 0.03125
    %v47 = vmul.f32 %v45, 0.03125
    %v48 = vadd.f32 %v46, 1e-06
    %v49 = vadd.f32 %v47, 1e-06
    %v50 = vrsqrt.pop %v48
    %v51 = vrsqrt.pop %v49
    %v52 = vmul.f32 %v38, %v50
    %v53 = vmul.f32 %v39, %v51
    %v54 = vld [vmem:[#allocation5] sm:$0x1]
    %v56 = vlaneseq
    %v57 = vshrl.u32 %v56, 7
    %v58 = vsub.s32 0, %v57
    %v59 = vrot.slane %v54, %v58
    %v61 = vmul.f32 %v59, %v52
    %v62 = vmul.f32 %v59, %v53
    %63 = vst [vmem:[#allocation7] sm:$0xff] %v61
    %64 = vst [vmem:[#allocation7 + $0x8] sm:$0xff] %v62
    // Predicated region
    $region18: #{tpu_custom_call.1} parent=1 // pred_check
      _
    $region19: #{tpu_custom_call.1} parent=1 // pred_check_branch
      %66 = sbr.rel (0) target = $region21
    $region20: #{tpu_custom_call.1} parent=1 // pred_region
      %s68 = ssub.s32 256, 256
      %69 = vsyncadd [#allocation4], %s68
      %s70 = sshll.u32 [#allocation7], 4
      %s71 = int_to_ptr.vmem [resolvable:$true] %s70
      %76 = dma.vmem_to_hbm [thread:$0]  %s71, 256, %s2, [#allocation4], 128, 128, 8
    $region21: #{tpu_custom_call.1} parent=1 // pred_fallthru
      _
    // Predicated region
    $region22: #{tpu_custom_call.1} parent=1 // pred_check
      _
    $region23: #{tpu_custom_call.1} parent=1 // pred_check_branch
      %78 = sbr.rel (0) target = $region25
    $region24: #{tpu_custom_call.1} parent=1 // pred_region
      %79 = dma.done [#allocation4], 256
    $region25: #{tpu_custom_call.1} parent=1 // pred_fallthru
      _
    %80 = vsyncpa [#allocation3], 1
    %81 = vsyncpa [#allocation6], 1
    %82 = vsyncpa [#allocation4], 1

</llo_original>
